<compile_context>
chip_gen: v7x
topology: tpu7x:2x2x1
jax: 0.10.0
libtpu: 0.0.40
codegen_flags: <defaults>
</compile_context>

<pallas_src>
import functools

import jax
import jax.numpy as jnp
from jax.experimental import pallas as pl
from jax.experimental.pallas import tpu as pltpu

HIDDEN = 256
LANE = 128


def _round_up(x, m):
    return ((x + m - 1) // m) * m


def _actor_kernel(max_ref, s_ref, w1_ref, b1_ref, w2_ref, b2_ref, w3_ref, b3_ref, o_ref):
    # Layer 1: relu(state @ W1 + b1)  — bf16 MXU inputs, f32 accumulation.
    h1 = jnp.dot(s_ref[...].astype(jnp.bfloat16), w1_ref[...],
                 preferred_element_type=jnp.float32)
    h1 = jnp.maximum(h1 + b1_ref[...], 0.0)
    # Layer 2: relu(h1 @ W2 + b2)
    h2 = jnp.dot(h1.astype(jnp.bfloat16), w2_ref[...],
                 preferred_element_type=jnp.float32)
    h2 = jnp.maximum(h2 + b2_ref[...], 0.0)
    # Layer 3: max_action * tanh(h2 @ W3 + b3) — W3/b3 are lane-padded to >=128 cols.
    h3 = jnp.dot(h2.astype(jnp.bfloat16), w3_ref[...],
                 preferred_element_type=jnp.float32)
    o_ref[...] = (max_ref[0, 0] * jnp.tanh(h3 + b3_ref[...])).astype(o_ref.dtype)


@functools.partial(jax.jit, static_argnames=("tile_b",))
def actor_forward(state, params, max_action, *, tile_b=256):
    """state: [B, state_dim] f32; params: dict of [in,out] weights + [1,out] biases."""
    batch, state_dim = state.shape
    action_dim = params["w3"].shape[1]

    # bf16 weights for the MXU (kernel accumulates in f32); biases stay f32.
    w1 = params["w1"].astype(jnp.bfloat16)
    w2 = params["w2"].astype(jnp.bfloat16)
    b1 = params["b1"].astype(jnp.float32)
    b2 = params["b2"].astype(jnp.float32)

    # Lane-dense epilogue: pad the third layer's output width to a multiple of 128.
    out_dim = _round_up(action_dim, LANE)
    w3 = jnp.zeros((HIDDEN, out_dim), jnp.bfloat16)
    w3 = w3.at[:, :action_dim].set(params["w3"].astype(jnp.bfloat16))
    b3 = jnp.zeros((1, out_dim), jnp.float32)
    b3 = b3.at[:, :action_dim].set(params["b3"].astype(jnp.float32))

    # Batch tile: large (amortizes ~0.35us/step), multiple of 8 sublanes; pad batch to it.
    tile_b = min(tile_b, _round_up(batch, 8))
    padded_batch = _round_up(batch, tile_b)
    if padded_batch != batch:
        state = jnp.pad(state, ((0, padded_batch - batch), (0, 0)))

    max_a = jnp.asarray(max_action, jnp.float32).reshape(1, 1)

    grid = (padded_batch // tile_b,)

    def resident(shape):  # weights/biases: same block every grid step -> stays in VMEM
        return pl.BlockSpec(shape, lambda i: (0, 0))

    out = pl.pallas_call(
        _actor_kernel,
        out_shape=jax.ShapeDtypeStruct((padded_batch, out_dim), jnp.float32),
        grid=grid,
        in_specs=[
            pl.BlockSpec(memory_space=pltpu.MemorySpace.SMEM),    # max_action scalar
            pl.BlockSpec((tile_b, state_dim), lambda i: (i, 0)),  # state (streamed)
            resident((state_dim, HIDDEN)),                        # w1
            resident((1, HIDDEN)),                                # b1
            resident((HIDDEN, HIDDEN)),                           # w2
            resident((1, HIDDEN)),                                # b2
            resident((HIDDEN, out_dim)),                          # w3 (lane-padded)
            resident((1, out_dim)),                               # b3 (lane-padded)
        ],
        out_specs=pl.BlockSpec((tile_b, out_dim), lambda i: (i, 0)),
        compiler_params=pltpu.CompilerParams(
            dimension_semantics=("parallel",),       # megacore sharding on v7x
            vmem_limit_bytes=32 * 1024 * 1024,       # generous headroom; usage ~1 MB
        ),
    )(max_a, state, w1, b1, w2, b2, w3, b3)

    return out[:batch, :action_dim]


def init_params(key, state_dim, action_dim):
    k1, k2, k3, k4, k5, k6 = jax.random.split(key, 6)
    scale1 = 1.0 / jnp.sqrt(state_dim)
    scale2 = 1.0 / jnp.sqrt(HIDDEN)
    return {
        # stored as [in, out] (i.e. PyTorch weight transposed)
        "w1": jax.random.uniform(k1, (state_dim, HIDDEN), jnp.float32, -scale1, scale1),
        "b1": jax.random.uniform(k2, (1, HIDDEN), jnp.float32, -scale1, scale1),
        "w2": jax.random.uniform(k3, (HIDDEN, HIDDEN), jnp.float32, -scale2, scale2),
        "b2": jax.random.uniform(k4, (1, HIDDEN), jnp.float32, -scale2, scale2),
        "w3": jax.random.uniform(k5, (HIDDEN, action_dim), jnp.float32, -scale2, scale2),
        "b3": jax.random.uniform(k6, (1, action_dim), jnp.float32, -scale2, scale2),
    }


def actor_reference_f32(state, params, max_action):
    h1 = jnp.maximum(state @ params["w1"] + params["b1"], 0.0)
    h2 = jnp.maximum(h1 @ params["w2"] + params["b2"], 0.0)
    return max_action * jnp.tanh(h2 @ params["w3"] + params["b3"])


def actor_reference_bf16(state, params, max_action):
    # Same bf16-operand / f32-accumulation arithmetic the kernel performs.
    bf = jnp.bfloat16
    h1 = jnp.dot(state.astype(bf), params["w1"].astype(bf),
                 preferred_element_type=jnp.float32) + params["b1"]
    h1 = jnp.maximum(h1, 0.0)
    h2 = jnp.dot(h1.astype(bf), params["w2"].astype(bf),
                 preferred_element_type=jnp.float32) + params["b2"]
    h2 = jnp.maximum(h2, 0.0)
    h3 = jnp.dot(h2.astype(bf), params["w3"].astype(bf),
                 preferred_element_type=jnp.float32) + params["b3"]
    return max_action * jnp.tanh(h3)


if __name__ == "__main__":
    batch, state_dim, action_dim = 8, 32, 8
    max_action = 2.0

    key = jax.random.PRNGKey(0)
    k_state, k_params, k_state2 = jax.random.split(key, 3)
    state = jax.random.normal(k_state, (batch, state_dim), dtype=jnp.float32)
    params = init_params(k_params, state_dim, action_dim)

    out = jax.block_until_ready(actor_forward(state, params, max_action))
    assert out.shape == (batch, action_dim)
    assert jnp.allclose(out, actor_reference_bf16(state, params, max_action),
                        atol=1e-3, rtol=1e-3)
    assert jnp.allclose(out, actor_reference_f32(state, params, max_action),
                        atol=5e-2, rtol=5e-2)

    # Exercise the multi-step batch grid + batch-padding path (40 rows, tile_b=16 -> grid 3).
    state2 = jax.random.normal(k_state2, (40, state_dim), dtype=jnp.float32)
    out2 = jax.block_until_ready(actor_forward(state2, params, max_action, tile_b=16))
    assert out2.shape == (40, action_dim)
    assert jnp.allclose(out2, actor_reference_bf16(state2, params, max_action),
                        atol=1e-3, rtol=1e-3)

    print("KERNEL_OK")
</pallas_src>

<mosaic_0001>
module attributes {stable_mosaic.version = 11 : i64} {
  func.func @_actor_kernel(%arg0: i32, %arg1: memref<1x1xf32, #tpu.memory_space<smem>>, %arg2: memref<8x32xf32, #tpu.memory_space<vmem>>, %arg3: memref<32x256xbf16, #tpu.memory_space<vmem>>, %arg4: memref<1x256xf32, #tpu.memory_space<vmem>>, %arg5: memref<256x256xbf16, #tpu.memory_space<vmem>>, %arg6: memref<1x256xf32, #tpu.memory_space<vmem>>, %arg7: memref<256x128xbf16, #tpu.memory_space<vmem>>, %arg8: memref<1x128xf32, #tpu.memory_space<vmem>>, %arg9: memref<8x128xf32, #tpu.memory_space<vmem>>) attributes {dimension_semantics = [#tpu.dimension_semantics<parallel>], iteration_bounds = array<i64: 1>, scalar_prefetch = 0 : i64, scratch_operands = 0 : i64, tpu.core_type = #tpu.core_type<tc>, window_params = [{transform_indices = @transform_0, window_bounds = array<i64: 1, 1>}, {transform_indices = @transform_1, window_bounds = array<i64: 8, 32>}, {pipeline_mode = #tpu.pipeline_mode<synchronous>, transform_indices = @transform_2, window_bounds = array<i64: 32, 256>}, {pipeline_mode = #tpu.pipeline_mode<synchronous>, transform_indices = @transform_3, window_bounds = array<i64: 1, 256>}, {pipeline_mode = #tpu.pipeline_mode<synchronous>, transform_indices = @transform_4, window_bounds = array<i64: 256, 256>}, {pipeline_mode = #tpu.pipeline_mode<synchronous>, transform_indices = @transform_5, window_bounds = array<i64: 1, 256>}, {pipeline_mode = #tpu.pipeline_mode<synchronous>, transform_indices = @transform_6, window_bounds = array<i64: 256, 128>}, {pipeline_mode = #tpu.pipeline_mode<synchronous>, transform_indices = @transform_7, window_bounds = array<i64: 1, 128>}, {transform_indices = @transform_8, window_bounds = array<i64: 8, 128>}]} {
    %c0 = arith.constant 0 : index
    %c0_0 = arith.constant 0 : index
    %0 = vector.load %arg2[%c0, %c0_0] : memref<8x32xf32, #tpu.memory_space<vmem>>, vector<8x32xf32>
    %1 = arith.truncf %0 : vector<8x32xf32> to vector<8x32xbf16>
    %c0_1 = arith.constant 0 : index
    %c0_2 = arith.constant 0 : index
    %2 = vector.load %arg3[%c0_1, %c0_2] : memref<32x256xbf16, #tpu.memory_space<vmem>>, vector<32x256xbf16>
    %cst = arith.constant dense<0.000000e+00> : vector<8x256xf32>
    %3 = tpu.matmul %1, %2, %cst {dimension_numbers = #tpu.dot_dimension_numbers<[1], [0], [0], [1], [0, 0, 1, 1], [], []>} : vector<8x32xbf16>, vector<32x256xbf16>, vector<8x256xf32> -> vector<8x256xf32>
    %c0_3 = arith.constant 0 : index
    %c0_4 = arith.constant 0 : index
    %4 = vector.load %arg4[%c0_3, %c0_4] : memref<1x256xf32, #tpu.memory_space<vmem>>, vector<1x256xf32>
    %5 = vector.broadcast %4 : vector<1x256xf32> to vector<8x256xf32>
    %6 = arith.addf %3, %5 : vector<8x256xf32>
    %cst_5 = arith.constant 0.000000e+00 : f32
    %7 = vector.broadcast %cst_5 : f32 to vector<8x256xf32>
    %8 = arith.maximumf %6, %7 : vector<8x256xf32>
    %9 = arith.truncf %8 : vector<8x256xf32> to vector<8x256xbf16>
    %c0_6 = arith.constant 0 : index
    %c0_7 = arith.constant 0 : index
    %10 = vector.load %arg5[%c0_6, %c0_7] : memref<256x256xbf16, #tpu.memory_space<vmem>>, vector<256x256xbf16>
    %cst_8 = arith.constant dense<0.000000e+00> : vector<8x256xf32>
    %11 = tpu.matmul %9, %10, %cst_8 {dimension_numbers = #tpu.dot_dimension_numbers<[1], [0], [0], [1], [0, 0, 1, 1], [], []>} : vector<8x256xbf16>, vector<256x256xbf16>, vector<8x256xf32> -> vector<8x256xf32>
    %c0_9 = arith.constant 0 : index
    %c0_10 = arith.constant 0 : index
    %12 = vector.load %arg6[%c0_9, %c0_10] : memref<1x256xf32, #tpu.memory_space<vmem>>, vector<1x256xf32>
    %13 = vector.broadcast %12 : vector<1x256xf32> to vector<8x256xf32>
    %14 = arith.addf %11, %13 : vector<8x256xf32>
    %cst_11 = arith.constant 0.000000e+00 : f32
    %15 = vector.broadcast %cst_11 : f32 to vector<8x256xf32>
    %16 = arith.maximumf %14, %15 : vector<8x256xf32>
    %17 = arith.truncf %16 : vector<8x256xf32> to vector<8x256xbf16>
    %c0_12 = arith.constant 0 : index
    %c0_13 = arith.constant 0 : index
    %18 = vector.load %arg7[%c0_12, %c0_13] : memref<256x128xbf16, #tpu.memory_space<vmem>>, vector<256x128xbf16>
    %cst_14 = arith.constant dense<0.000000e+00> : vector<8x128xf32>
    %19 = tpu.matmul %17, %18, %cst_14 {dimension_numbers = #tpu.dot_dimension_numbers<[1], [0], [0], [1], [0, 0, 1, 1], [], []>} : vector<8x256xbf16>, vector<256x128xbf16>, vector<8x128xf32> -> vector<8x128xf32>
    %c0_15 = arith.constant 0 : index
    %c0_16 = arith.constant 0 : index
    %20 = memref.load %arg1[%c0_15, %c0_16] : memref<1x1xf32, #tpu.memory_space<smem>>
    %c0_17 = arith.constant 0 : index
    %c0_18 = arith.constant 0 : index
    %21 = vector.load %arg8[%c0_17, %c0_18] : memref<1x128xf32, #tpu.memory_space<vmem>>, vector<1x128xf32>
    %22 = vector.broadcast %21 : vector<1x128xf32> to vector<8x128xf32>
    %23 = arith.addf %19, %22 : vector<8x128xf32>
    %24 = math.tanh %23 : vector<8x128xf32>
    %25 = vector.broadcast %20 : f32 to vector<8x128xf32>
    %26 = arith.mulf %25, %24 : vector<8x128xf32>
    %c0_19 = arith.constant 0 : index
    %c0_20 = arith.constant 0 : index
    %27 = vector.load %arg9[%c0_19, %c0_20] : memref<8x128xf32, #tpu.memory_space<vmem>>, vector<8x128xf32>
    tpu.vector_store %arg9[%c0_19, %c0_20], %26 {strides = array<i32>} : memref<8x128xf32, #tpu.memory_space<vmem>>, vector<8x128xf32>,
    return
  }
  func.func @transform_0(%arg0: i32) -> (i32, i32) {
    %c0_i32 = arith.constant 0 : i32
    %c0_i32_0 = arith.constant 0 : i32
    %c0_i32_1 = arith.constant 0 : i32
    return %c0_i32, %c0_i32_0 : i32, i32
  }
  func.func @transform_1(%arg0: i32) -> (i32, i32) {
    %c0_i32 = arith.constant 0 : i32
    %c0_i32_0 = arith.constant 0 : i32
    return %arg0, %c0_i32 : i32, i32
  }
  func.func @transform_2(%arg0: i32) -> (i32, i32) {
    %c0_i32 = arith.constant 0 : i32
    %c0_i32_0 = arith.constant 0 : i32
    %c0_i32_1 = arith.constant 0 : i32
    return %c0_i32, %c0_i32_0 : i32, i32
  }
  func.func @transform_3(%arg0: i32) -> (i32, i32) {
    %c0_i32 = arith.constant 0 : i32
    %c0_i32_0 = arith.constant 0 : i32
    %c0_i32_1 = arith.constant 0 : i32
    return %c0_i32, %c0_i32_0 : i32, i32
  }
  func.func @transform_4(%arg0: i32) -> (i32, i32) {
    %c0_i32 = arith.constant 0 : i32
    %c0_i32_0 = arith.constant 0 : i32
    %c0_i32_1 = arith.constant 0 : i32
    return %c0_i32, %c0_i32_0 : i32, i32
  }
  func.func @transform_5(%arg0: i32) -> (i32, i32) {
    %c0_i32 = arith.constant 0 : i32
    %c0_i32_0 = arith.constant 0 : i32
    %c0_i32_1 = arith.constant 0 : i32
    return %c0_i32, %c0_i32_0 : i32, i32
  }
  func.func @transform_6(%arg0: i32) -> (i32, i32) {
    %c0_i32 = arith.constant 0 : i32
    %c0_i32_0 = arith.constant 0 : i32
    %c0_i32_1 = arith.constant 0 : i32
    return %c0_i32, %c0_i32_0 : i32, i32
  }
  func.func @transform_7(%arg0: i32) -> (i32, i32) {
    %c0_i32 = arith.constant 0 : i32
    %c0_i32_0 = arith.constant 0 : i32
    %c0_i32_1 = arith.constant 0 : i32
    return %c0_i32, %c0_i32_0 : i32, i32
  }
  func.func @transform_8(%arg0: i32) -> (i32, i32) {
    %c0_i32 = arith.constant 0 : i32
    %c0_i32_0 = arith.constant 0 : i32
    return %arg0, %c0_i32 : i32, i32
  }
}

</mosaic_0001>

<llo_original>
// kernel: actor_forward.1
$region0: #{actor_forward.1}
  #allocation0 [shape = 'u32[]', space=smem, size = 0x4, offset = 0x4, fixed_abs, tag = 'smem constant byte address 0x4 - core index']
  #allocation1 [shape = 'u32[144,128]{1,0:T(1,128)}', space=vmem, size = 0x12000, scoped, tag = 'internal scratch']
  #allocation2 [shape = 'f32[1,1]{1,0:T(1,128)S(6)}', space=smem, size = 0x200, scoped, tag = 'scoped memory for actor_forward.1']
  %s0 = inlined_call_operand.<no memory space> [shape: f32[1,1], index: 0, kind: input, shape index: {}]
  %s1 = inlined_call_operand.vmem [shape: f32[8,32], index: 1, kind: input, shape index: {}]
  %s2 = inlined_call_operand.vmem [shape: bf16[32,256], index: 2, kind: input, shape index: {}]
  %s3 = inlined_call_operand.vmem [shape: f32[1,256], index: 3, kind: input, shape index: {}]
  %s4 = inlined_call_operand.vmem [shape: bf16[256,256], index: 4, kind: input, shape index: {}]
  %s5 = inlined_call_operand.vmem [shape: f32[1,256], index: 5, kind: input, shape index: {}]
  %s6 = inlined_call_operand.vmem [shape: bf16[256,128], index: 6, kind: input, shape index: {}]
  %s7 = inlined_call_operand.vmem [shape: f32[1,128], index: 7, kind: input, shape index: {}]
  %s8 = inlined_call_operand.hbm [shape: f32[8,128], index: 8, kind: output, shape index: {}]
  %s9 = sld [smem:[#allocation0]]
  $region42: #{actor_forward.1} parent=0
    _
  %s11 = ssub.s32 1, %s9
  %s12 = scalar_select 0, %s11, %s9
  %13 = sst [smem:[#allocation2]] %s0
  $region1: #{actor_forward.1} parent=0
    #allocation3 [shape = 'u8[4096]{0}', space=vmem, size = 0x1000, scoped, tag = 'output window, operand 0, single buffered']
    #allocation4 [shape = 's32[1]{0}', space=sflag, size = 0x4, scoped, tag = 'scoped memory for actor_forward.1']
    %14 = vsyncpa [#allocation4], 0
    // Predicated region
    $region2: #{actor_forward.1} parent=1 // pred_check
      _
    $region3: #{actor_forward.1} parent=1 // pred_check_branch
      %16 = sbr.rel (0) target = $region5
    $region4: #{actor_forward.1} parent=1 // pred_region
      _
    $region5: #{actor_forward.1} parent=1 // pred_fallthru
      _
    // Predicated region
    $region6: #{actor_forward.1} parent=1 // pred_check
      _
    $region7: #{actor_forward.1} parent=1 // pred_check_branch
      %18 = sbr.rel (0) target = $region9
    $region8: #{actor_forward.1} parent=1 // pred_region
      _
    $region9: #{actor_forward.1} parent=1 // pred_fallthru
      _
    // Predicated region
    $region10: #{actor_forward.1} parent=1 // pred_check
      _
    $region11: #{actor_forward.1} parent=1 // pred_check_branch
      %20 = sbr.rel (0) target = $region13
    $region12: #{actor_forward.1} parent=1 // pred_region
      _
    $region13: #{actor_forward.1} parent=1 // pred_fallthru
      _
    // Predicated region
    $region14: #{actor_forward.1} parent=1 // pred_check
      _
    $region15: #{actor_forward.1} parent=1 // pred_check_branch
      %22 = sbr.rel (0) target = $region17
    $region16: #{actor_forward.1} parent=1 // pred_region
      _
    $region17: #{actor_forward.1} parent=1 // pred_fallthru
      _
    // Predicated region
    $region18: #{actor_forward.1} parent=1 // pred_check
      _
    $region19: #{actor_forward.1} parent=1 // pred_check_branch
      %24 = sbr.rel (0) target = $region21
    $region20: #{actor_forward.1} parent=1 // pred_region
      _
    $region21: #{actor_forward.1} parent=1 // pred_fallthru
      _
    // Predicated region
    $region22: #{actor_forward.1} parent=1 // pred_check
      _
    $region23: #{actor_forward.1} parent=1 // pred_check_branch
      %26 = sbr.rel (0) target = $region25
    $region24: #{actor_forward.1} parent=1 // pred_region
      _
    $region25: #{actor_forward.1} parent=1 // pred_fallthru
      _
    // Predicated region
    $region26: #{actor_forward.1} parent=1 // pred_check
      _
    $region27: #{actor_forward.1} parent=1 // pred_check_branch
      %28 = sbr.rel (0) target = $region29
    $region28: #{actor_forward.1} parent=1 // pred_region
      _
    $region29: #{actor_forward.1} parent=1 // pred_fallthru
      _
    // Predicated region
    $region30: #{actor_forward.1} parent=1 // pred_check
      _
    $region31: #{actor_forward.1} parent=1 // pred_check_branch
      %30 = sbr.rel (0) target = $region33
    $region32: #{actor_forward.1} parent=1 // pred_region
      _
    $region33: #{actor_forward.1} parent=1 // pred_fallthru
      _
    %v32 = vld [vmem:[%s1] sm:$0xff]
    %v33 = vpack.c.bf16 %v32, %v32
    %v34 = vld [vmem:[%s2] sm:$0xff]
    %v35 = vld [vmem:[%s2 + $0x8] sm:$0xff]
    %v36 = vld [vmem:[%s2 + $0x10] sm:$0xff]
    %v37 = vld [vmem:[%s2 + $0x18] sm:$0xff]
    %v38 = vld [vmem:[%s3] sm:$0x3]
    %v40 = vlaneseq
    %v41 = vshrl.u32 %v40, 7
    %v42 = vsub.s32 0, %v41
    %v43 = vrot.slane %v38, %v42
    %v44 = vlaneseq
    %v45 = vshrl.u32 %v44, 7
    %v46 = vsub.s32 1, %v45
    %v47 = vrot.slane %v38, %v46
    %v54 = vunpack.c.l.b16 %v34
    %v55 = vunpack.c.h.b16 %v34
    %v56 = vunpack.c.l.b16 %v35
    %v57 = vunpack.c.h.b16 %v35
    %v58 = vunpack.c.l.b16 %v36
    %v59 = vunpack.c.h.b16 %v36
    %v60 = vunpack.c.l.b16 %v37
    %v61 = vunpack.c.h.b16 %v37
    %v62 = vpack.c.b16 %v56, %v54
    %v63 = vpack.c.b16 %v57, %v55
    %v64 = vpack.c.b16 %v60, %v58
    %v65 = vpack.c.b16 %v61, %v59
    %vm70 = vcmask 261120
    %v72 = vsel %vm70, %v33, 0
    %74 = vmatprep.subr.bf16.mxu0 %v63
    %75 = vmatpush1.bf16.msra.mxu0 %v62
    %76 = vmatprep.subr.bf16.mxu0 %v65
    %77 = vmatpush1.bf16.msra.mxu0 %v64
    %78 = vmatprep.subr.bf16.mxu0 0
    %79 = vmatpush1.bf16.msra.mxu0 0
    %80 = vmatprep.subr.bf16.mxu0 0
    %81 = vmatpush1.bf16.msra.mxu0 0
    %82 = vmatprep.subr.bf16.mxu0 0
    %83 = vmatpush1.bf16.msra.mxu0 0
    %84 = vmatprep.subr.bf16.mxu0 0
    %85 = vmatpush1.bf16.msra.mxu0 0
    %86 = vmatprep.subr.bf16.mxu0 0
    %87 = vmatpush1.bf16.msra.mxu0 0
    %88 = vmatprep.subr.bf16.mxu0 0
    %89 = vmatpush1.bf16.msra.mxu0 0
    %90 = vmatprep.subr.bf16.mxu0 0
    %91 = vmatpush1.bf16.msra.mxu0 0
    %92 = vmatprep.subr.bf16.mxu0 0
    %93 = vmatpush1.bf16.msra.mxu0 0
    %94 = vmatprep.subr.bf16.mxu0 0
    %95 = vmatpush1.bf16.msra.mxu0 0
    %96 = vmatprep.subr.bf16.mxu0 0
    %97 = vmatpush1.bf16.msra.mxu0 0
    %98 = vmatprep.subr.bf16.mxu0 0
    %99 = vmatpush1.bf16.msra.mxu0 0
    %100 = vmatprep.subr.bf16.mxu0 0
    %101 = vmatpush1.bf16.msra.mxu0 0
    %102 = vmatprep.subr.bf16.mxu0 0
    %103 = vmatpush1.bf16.msra.mxu0 0
    %104 = vmatprep.subr.bf16.mxu0 0
    %105 = vmatpush1.bf16.msra.mxu0 0
    %106 = vmatprep.mubr.bf16.mxu0 0
    %107 = vmatmul.mubr.bf16.gmra.mrb[0].mxu0 %v72
    %v108 = vpop.f32.mrb[0].mxu0
    %v109 = vadd.f32 %v43, %v108
    %v110 = vpop.f32.mrb[0].mxu0
    %v111 = vadd.f32 %v47, %v110
    %v112 = vpop.f32.mrb[0].mxu0
    %v113 = vpop.f32.mrb[0].mxu0
    %114 = vdwg.mxu0
    %v115 = vmax.f32 %v109, 0.0
    %v116 = vmax.f32 %v111, 0.0
    %v117 = vpack.c.bf16 %v115, %v115
    %v118 = vpack.c.bf16 %v116, %v116
    %v119 = vld [vmem:[%s4] sm:$0xff]
    %v120 = vld [vmem:[%s4 + $0x8] sm:$0xff]
    %v121 = vld [vmem:[%s4 + $0x10] sm:$0xff]
    %v122 = vld [vmem:[%s4 + $0x18] sm:$0xff]
    %v123 = vld [vmem:[%s4 + $0x20] sm:$0xff]
    %v124 = vld [vmem:[%s4 + $0x28] sm:$0xff]
    %v125 = vld [vmem:[%s4 + $0x30] sm:$0xff]
    %v126 = vld [vmem:[%s4 + $0x38] sm:$0xff]
    %v127 = vld [vmem:[%s4 + $0x40] sm:$0xff]
    %v128 = vld [vmem:[%s4 + $0x48] sm:$0xff]
    %v129 = vld [vmem:[%s4 + $0x50] sm:$0xff]
    %v130 = vld [vmem:[%s4 + $0x58] sm:$0xff]
    %v131 = vld [vmem:[%s4 + $0x60] sm:$0xff]
    %v132 = vld [vmem:[%s4 + $0x68] sm:$0xff]
    %v133 = vld [vmem:[%s4 + $0x70] sm:$0xff]
    %v134 = vld [vmem:[%s4 + $0x78] sm:$0xff]
    %v135 = vld [vmem:[%s4 + $0x80] sm:$0xff]
    %v136 = vld [vmem:[%s4 + $0x88] sm:$0xff]
    %v137 = vld [vmem:[%s4 + $0x90] sm:$0xff]
    %v138 = vld [vmem:[%s4 + $0x98] sm:$0xff]
    %v139 = vld [vmem:[%s4 + $0xa0] sm:$0xff]
    %v140 = vld [vmem:[%s4 + $0xa8] sm:$0xff]
    %v141 = vld [vmem:[%s4 + $0xb0] sm:$0xff]
    %v142 = vld [vmem:[%s4 + $0xb8] sm:$0xff]
    %v143 = vld [vmem:[%s4 + $0xc0] sm:$0xff]
    %v144 = vld [vmem:[%s4 + $0xc8] sm:$0xff]
    %v145 = vld [vmem:[%s4 + $0xd0] sm:$0xff]
    %v146 = vld [vmem:[%s4 + $0xd8] sm:$0xff]
    %v147 = vld [vmem:[%s4 + $0xe0] sm:$0xff]
    %v148 = vld [vmem:[%s4 + $0xe8] sm:$0xff]
    %v149 = vld [vmem:[%s4 + $0xf0] sm:$0xff]
    %v150 = vld [vmem:[%s4 + $0xf8] sm:$0xff]
    %v151 = vld [vmem:[%s5] sm:$0x3]
    %v153 = vlaneseq
    %v154 = vshrl.u32 %v153, 7
    %v155 = vsub.s32 0, %v154
    %v156 = vrot.slane %v151, %v155
    %v157 = vlaneseq
    %v158 = vshrl.u32 %v157, 7
    %v159 = vsub.s32 1, %v158
    %v160 = vrot.slane %v151, %v159
    %v195 = vunpack.c.l.b16 %v119
    %v196 = vunpack.c.h.b16 %v119
    %v197 = vunpack.c.l.b16 %v120
    %v198 = vunpack.c.h.b16 %v120
    %v199 = vunpack.c.l.b16 %v121
    %v200 = vunpack.c.h.b16 %v121
    %v201 = vunpack.c.l.b16 %v122
    %v202 = vunpack.c.h.b16 %v122
    %v203 = vunpack.c.l.b16 %v123
    %v204 = vunpack.c.h.b16 %v123
    %v205 = vunpack.c.l.b16 %v124
    %v206 = vunpack.c.h.b16 %v124
    %v207 = vunpack.c.l.b16 %v125
    %v208 = vunpack.c.h.b16 %v125
    %v209 = vunpack.c.l.b16 %v126
    %v210 = vunpack.c.h.b16 %v126
    %v211 = vunpack.c.l.b16 %v127
    %v212 = vunpack.c.h.b16 %v127
    %v213 = vunpack.c.l.b16 %v128
    %v214 = vunpack.c.h.b16 %v128
    %v215 = vunpack.c.l.b16 %v129
    %v216 = vunpack.c.h.b16 %v129
    %v217 = vunpack.c.l.b16 %v130
    %v218 = vunpack.c.h.b16 %v130
    %v219 = vunpack.c.l.b16 %v131
    %v220 = vunpack.c.h.b16 %v131
    %v221 = vunpack.c.l.b16 %v132
    %v222 = vunpack.c.h.b16 %v132
    %v223 = vunpack.c.l.b16 %v133
    %v224 = vunpack.c.h.b16 %v133
    %v225 = vunpack.c.l.b16 %v134
    %v226 = vunpack.c.h.b16 %v134
    %v227 = vunpack.c.l.b16 %v135
    %v228 = vunpack.c.h.b16 %v135
    %v229 = vunpack.c.l.b16 %v136
    %v230 = vunpack.c.h.b16 %v136
    %v231 = vunpack.c.l.b16 %v137
    %v232 = vunpack.c.h.b16 %v137
    %v233 = vunpack.c.l.b16 %v138
    %v234 = vunpack.c.h.b16 %v138
    %v235 = vunpack.c.l.b16 %v139
    %v236 = vunpack.c.h.b16 %v139
    %v237 = vunpack.c.l.b16 %v140
    %v238 = vunpack.c.h.b16 %v140
    %v239 = vunpack.c.l.b16 %v141
    %v240 = vunpack.c.h.b16 %v141
    %v241 = vunpack.c.l.b16 %v142
    %v242 = vunpack.c.h.b16 %v142
    %v243 = vunpack.c.l.b16 %v143
    %v244 = vunpack.c.h.b16 %v143
    %v245 = vunpack.c.l.b16 %v144
    %v246 = vunpack.c.h.b16 %v144
    %v247 = vunpack.c.l.b16 %v145
    %v248 = vunpack.c.h.b16 %v145
    %v249 = vunpack.c.l.b16 %v146
    %v250 = vunpack.c.h.b16 %v146
    %v251 = vunpack.c.l.b16 %v147
    %v252 = vunpack.c.h.b16 %v147
    %v253 = vunpack.c.l.b16 %v148
    %v254 = vunpack.c.h.b16 %v148
    %v255 = vunpack.c.l.b16 %v149
    %v256 = vunpack.c.h.b16 %v149
    %v257 = vunpack.c.l.b16 %v150
    %v258 = vunpack.c.h.b16 %v150
    %v259 = vpack.c.b16 %v197, %v195
    %v260 = vpack.c.b16 %v198, %v196
    %v261 = vpack.c.b16 %v201, %v199
    %v262 = vpack.c.b16 %v202, %v200
    %v263 = vpack.c.b16 %v205, %v203
    %v264 = vpack.c.b16 %v206, %v204
    %v265 = vpack.c.b16 %v209, %v207
    %v266 = vpack.c.b16 %v210, %v208
    %v267 = vpack.c.b16 %v213, %v211
    %v268 = vpack.c.b16 %v214, %v212
    %v269 = vpack.c.b16 %v217, %v215
    %v270 = vpack.c.b16 %v218, %v216
    %v271 = vpack.c.b16 %v221, %v219
    %v272 = vpack.c.b16 %v222, %v220
    %v273 = vpack.c.b16 %v225, %v223
    %v274 = vpack.c.b16 %v226, %v224
    %v275 = vpack.c.b16 %v229, %v227
    %v276 = vpack.c.b16 %v230, %v228
    %v277 = vpack.c.b16 %v233, %v231
    %v278 = vpack.c.b16 %v234, %v232
    %v279 = vpack.c.b16 %v237, %v235
    %v280 = vpack.c.b16 %v238, %v236
    %v281 = vpack.c.b16 %v241, %v239
    %v282 = vpack.c.b16 %v242, %v240
    %v283 = vpack.c.b16 %v245, %v243
    %v284 = vpack.c.b16 %v246, %v244
    %v285 = vpack.c.b16 %v249, %v247
    %v286 = vpack.c.b16 %v250, %v248
    %v287 = vpack.c.b16 %v253, %v251
    %v288 = vpack.c.b16 %v254, %v252
    %v289 = vpack.c.b16 %v257, %v255
    %v290 = vpack.c.b16 %v258, %v256
    %323 = vmatprep.subr.bf16.mxu0 %v260
    %324 = vmatpush1.bf16.msra.mxu0 %v259
    %325 = vmatprep.subr.bf16.mxu0 %v262
    %326 = vmatpush1.bf16.msra.mxu0 %v261
    %327 = vmatprep.subr.bf16.mxu0 %v264
    %328 = vmatpush1.bf16.msra.mxu0 %v263
    %329 = vmatprep.subr.bf16.mxu0 %v266
    %330 = vmatpush1.bf16.msra.mxu0 %v265
    %331 = vmatprep.subr.bf16.mxu0 %v268
    %332 = vmatpush1.bf16.msra.mxu0 %v267
    %333 = vmatprep.subr.bf16.mxu0 %v270
    %334 = vmatpush1.bf16.msra.mxu0 %v269
    %335 = vmatprep.subr.bf16.mxu0 %v272
    %336 = vmatpush1.bf16.msra.mxu0 %v271
    %337 = vmatprep.subr.bf16.mxu0 %v274
    %338 = vmatpush1.bf16.msra.mxu0 %v273
    %339 = vmatprep.subr.bf16.mxu0 %v276
    %340 = vmatpush1.bf16.msra.mxu0 %v275
    %341 = vmatprep.subr.bf16.mxu0 %v278
    %342 = vmatpush1.bf16.msra.mxu0 %v277
    %343 = vmatprep.subr.bf16.mxu0 %v280
    %344 = vmatpush1.bf16.msra.mxu0 %v279
    %345 = vmatprep.subr.bf16.mxu0 %v282
    %346 = vmatpush1.bf16.msra.mxu0 %v281
    %347 = vmatprep.subr.bf16.mxu0 %v284
    %348 = vmatpush1.bf16.msra.mxu0 %v283
    %349 = vmatprep.subr.bf16.mxu0 %v286
    %350 = vmatpush1.bf16.msra.mxu0 %v285
    %351 = vmatprep.subr.bf16.mxu0 %v288
    %352 = vmatpush1.bf16.msra.mxu0 %v287
    %353 = vmatprep.subr.bf16.mxu0 %v290
    %354 = vmatpush1.bf16.msra.mxu0 %v289
    %355 = vmatprep.mubr.bf16.mxu0 %v118
    %356 = vmatmul.mubr.bf16.gmra.mrb[0].mxu0 %v117
    %v357 = vpop.f32.mrb[0].mxu0
    %v358 = vadd.f32 %v156, %v357
    %v359 = vpop.f32.mrb[0].mxu0
    %v360 = vadd.f32 %v160, %v359
    %v361 = vpop.f32.mrb[0].mxu0
    %v362 = vpop.f32.mrb[0].mxu0
    %363 = vdwg.mxu0
    %v364 = vmax.f32 %v358, 0.0
    %v365 = vmax.f32 %v360, 0.0
    %v366 = vpack.c.bf16 %v364, %v364
    %v367 = vpack.c.bf16 %v365, %v365
    %v368 = vld [vmem:[%s6] sm:$0xf]
    %v369 = vld [vmem:[%s6 + $0x4] sm:$0xf]
    %v370 = vld [vmem:[%s6 + $0x8] sm:$0xf]
    %v371 = vld [vmem:[%s6 + $0xc] sm:$0xf]
    %v372 = vld [vmem:[%s6 + $0x10] sm:$0xf]
    %v373 = vld [vmem:[%s6 + $0x14] sm:$0xf]
    %v374 = vld [vmem:[%s6 + $0x18] sm:$0xf]
    %v375 = vld [vmem:[%s6 + $0x1c] sm:$0xf]
    %v376 = vld [vmem:[%s6 + $0x20] sm:$0xf]
    %v377 = vld [vmem:[%s6 + $0x24] sm:$0xf]
    %v378 = vld [vmem:[%s6 + $0x28] sm:$0xf]
    %v379 = vld [vmem:[%s6 + $0x2c] sm:$0xf]
    %v380 = vld [vmem:[%s6 + $0x30] sm:$0xf]
    %v381 = vld [vmem:[%s6 + $0x34] sm:$0xf]
    %v382 = vld [vmem:[%s6 + $0x38] sm:$0xf]
    %v383 = vld [vmem:[%s6 + $0x3c] sm:$0xf]
    %v384 = vld [vmem:[%s6 + $0x40] sm:$0xf]
    %v385 = vld [vmem:[%s6 + $0x44] sm:$0xf]
    %v386 = vld [vmem:[%s6 + $0x48] sm:$0xf]
    %v387 = vld [vmem:[%s6 + $0x4c] sm:$0xf]
    %v388 = vld [vmem:[%s6 + $0x50] sm:$0xf]
    %v389 = vld [vmem:[%s6 + $0x54] sm:$0xf]
    %v390 = vld [vmem:[%s6 + $0x58] sm:$0xf]
    %v391 = vld [vmem:[%s6 + $0x5c] sm:$0xf]
    %v392 = vld [vmem:[%s6 + $0x60] sm:$0xf]
    %v393 = vld [vmem:[%s6 + $0x64] sm:$0xf]
    %v394 = vld [vmem:[%s6 + $0x68] sm:$0xf]
    %v395 = vld [vmem:[%s6 + $0x6c] sm:$0xf]
    %v396 = vld [vmem:[%s6 + $0x70] sm:$0xf]
    %v397 = vld [vmem:[%s6 + $0x74] sm:$0xf]
    %v398 = vld [vmem:[%s6 + $0x78] sm:$0xf]
    %v399 = vld [vmem:[%s6 + $0x7c] sm:$0xf]
    %s400 = sld [smem:[#allocation2]]
    %v401 = vld [vmem:[%s7] sm:$0x1]
    %v403 = vlaneseq
    %v404 = vshrl.u32 %v403, 7
    %v405 = vsub.s32 0, %v404
    %v406 = vrot.slane %v401, %v405
    %v440 = vunpack.c.l.b16 %v368
    %v441 = vunpack.c.l.b16 %v369
    %v442 = vunpack.c.l.b16 %v370
    %v443 = vunpack.c.l.b16 %v371
    %v444 = vunpack.c.l.b16 %v372
    %v445 = vunpack.c.l.b16 %v373
    %v446 = vunpack.c.l.b16 %v374
    %v447 = vunpack.c.l.b16 %v375
    %v448 = vunpack.c.l.b16 %v376
    %v449 = vunpack.c.l.b16 %v377
    %v450 = vunpack.c.l.b16 %v378
    %v451 = vunpack.c.l.b16 %v379
    %v452 = vunpack.c.l.b16 %v380
    %v453 = vunpack.c.l.b16 %v381
    %v454 = vunpack.c.l.b16 %v382
    %v455 = vunpack.c.l.b16 %v383
    %v456 = vunpack.c.l.b16 %v384
    %v457 = vunpack.c.l.b16 %v385
    %v458 = vunpack.c.l.b16 %v386
    %v459 = vunpack.c.l.b16 %v387
    %v460 = vunpack.c.l.b16 %v388
    %v461 = vunpack.c.l.b16 %v389
    %v462 = vunpack.c.l.b16 %v390
    %v463 = vunpack.c.l.b16 %v391
    %v464 = vunpack.c.l.b16 %v392
    %v465 = vunpack.c.l.b16 %v393
    %v466 = vunpack.c.l.b16 %v394
    %v467 = vunpack.c.l.b16 %v395
    %v468 = vunpack.c.l.b16 %v396
    %v469 = vunpack.c.l.b16 %v397
    %v470 = vunpack.c.l.b16 %v398
    %v471 = vunpack.c.l.b16 %v399
    %v472 = vpack.c.b16 %v441, %v440
    %v473 = vpack.c.b16 %v443, %v442
    %v474 = vpack.c.b16 %v445, %v444
    %v475 = vpack.c.b16 %v447, %v446
    %v476 = vpack.c.b16 %v449, %v448
    %v477 = vpack.c.b16 %v451, %v450
    %v478 = vpack.c.b16 %v453, %v452
    %v479 = vpack.c.b16 %v455, %v454
    %v480 = vpack.c.b16 %v457, %v456
    %v481 = vpack.c.b16 %v459, %v458
    %v482 = vpack.c.b16 %v461, %v460
    %v483 = vpack.c.b16 %v463, %v462
    %v484 = vpack.c.b16 %v465, %v464
    %v485 = vpack.c.b16 %v467, %v466
    %v486 = vpack.c.b16 %v469, %v468
    %v487 = vpack.c.b16 %v471, %v470
    %504 = vmatprep.subr.bf16.mxu0 0
    %505 = vmatpush1.bf16.msra.mxu0 %v472
    %506 = vmatprep.subr.bf16.mxu0 0
    %507 = vmatpush1.bf16.msra.mxu0 %v473
    %508 = vmatprep.subr.bf16.mxu0 0
    %509 = vmatpush1.bf16.msra.mxu0 %v474
    %510 = vmatprep.subr.bf16.mxu0 0
    %511 = vmatpush1.bf16.msra.mxu0 %v475
    %512 = vmatprep.subr.bf16.mxu0 0
    %513 = vmatpush1.bf16.msra.mxu0 %v476
    %514 = vmatprep.subr.bf16.mxu0 0
    %515 = vmatpush1.bf16.msra.mxu0 %v477
    %516 = vmatprep.subr.bf16.mxu0 0
    %517 = vmatpush1.bf16.msra.mxu0 %v478
    %518 = vmatprep.subr.bf16.mxu0 0
    %519 = vmatpush1.bf16.msra.mxu0 %v479
    %520 = vmatprep.subr.bf16.mxu0 0
    %521 = vmatpush1.bf16.msra.mxu0 %v480
    %522 = vmatprep.subr.bf16.mxu0 0
    %523 = vmatpush1.bf16.msra.mxu0 %v481
    %524 = vmatprep.subr.bf16.mxu0 0
    %525 = vmatpush1.bf16.msra.mxu0 %v482
    %526 = vmatprep.subr.bf16.mxu0 0
    %527 = vmatpush1.bf16.msra.mxu0 %v483
    %528 = vmatprep.subr.bf16.mxu0 0
    %529 = vmatpush1.bf16.msra.mxu0 %v484
    %530 = vmatprep.subr.bf16.mxu0 0
    %531 = vmatpush1.bf16.msra.mxu0 %v485
    %532 = vmatprep.subr.bf16.mxu0 0
    %533 = vmatpush1.bf16.msra.mxu0 %v486
    %534 = vmatprep.subr.bf16.mxu0 0
    %535 = vmatpush1.bf16.msra.mxu0 %v487
    %536 = vmatprep.mubr.bf16.mxu0 %v367
    %537 = vmatmul.mubr.bf16.gmra.mrb[0].mxu0 %v366
    %v538 = vpop.f32.mrb[0].mxu0
    %v539 = vadd.f32 %v406, %v538
    %v540 = vpop.f32.mrb[0].mxu0
    %v541 = vpop.f32.mrb[0].mxu0
    %v542 = vpop.f32.mrb[0].mxu0
    %543 = vdwg.mxu0
    %v544 = vtanh.pop %v539
    %v545 = vstv %s400
    %v546 = vmul.f32 %v545, %v544
    %547 = vst [vmem:[#allocation3] sm:$0xff] %v546
    // Predicated region
    $region34: #{actor_forward.1} parent=1 // pred_check
      _
    $region35: #{actor_forward.1} parent=1 // pred_check_branch
      %549 = sbr.rel (0) target = $region37
    $region36: #{actor_forward.1} parent=1 // pred_region
      %s551 = ssub.s32 128, 128
      %552 = vsyncadd [#allocation4], %s551
      %s554 = sshll.u32 [#allocation3], 4
      %s555 = int_to_ptr.vmem [resolvable:$true] %s554
      %557 = dma.vmem_to_hbm [thread:$0]  %s555, 128, %s8, [#allocation4]
    $region37: #{actor_forward.1} parent=1 // pred_fallthru
      _
    // Predicated region
    $region38: #{actor_forward.1} parent=1 // pred_check
      _
    $region39: #{actor_forward.1} parent=1 // pred_check_branch
      %559 = sbr.rel (0) target = $region41
    $region40: #{actor_forward.1} parent=1 // pred_region
      %560 = dma.done [#allocation4], 128
    $region41: #{actor_forward.1} parent=1 // pred_fallthru
      _
    %561 = vsyncpa [#allocation4], 1

</llo_original>
